<compile_context>
chip_gen: v5e
topology: v5e:2x2
jax: 0.10.0
libtpu: 0.0.40
codegen_flags: <defaults>
</compile_context>

<pallas_src>
import functools

import jax
import jax.numpy as jnp
from jax import lax
from jax.experimental import pallas as pl
from jax.experimental.pallas import tpu as pltpu


def _dedicom_kernel(a_ref, r_ref, m_ref, recon_ref, loss_ref, *, use_softmax: bool):
    # Each grid step owns Bt (A, R, M) triples.
    A = a_ref[...]  # (Bt, n, k) float32

    if use_softmax:
        # col_scaled_row_softmax: z = (A - col_mean) / col_std (unbiased std,
        # matching torch.std default ddof=1), then row-wise softmax.
        n_rows = A.shape[1]
        col_mean = jnp.mean(A, axis=1, keepdims=True)            # (Bt,1,k)
        Ac = A - col_mean                                        # centered; reused below
        col_var = jnp.sum(Ac * Ac, axis=1, keepdims=True) * (1.0 / (n_rows - 1))
        # 1/std via EUP rsqrt + one Newton step (full f32 accuracy, no divide).
        inv_std = lax.rsqrt(col_var)
        inv_std = inv_std * (1.5 - 0.5 * col_var * inv_std * inv_std)
        z = Ac * inv_std
        z = z - jnp.max(z, axis=2, keepdims=True)
        e = jnp.exp(z)
        denom = jnp.sum(e, axis=2, keepdims=True)
        # EUP approximate reciprocal + one Newton refinement step.
        r = pl.reciprocal(denom, approx=True)
        r = r * (2.0 - denom * r)
        S = e * r
    else:
        S = A

    # M_recon = S @ R @ S.T per batch element: two batched MXU contractions
    # with fp32 accumulation; the second contracts the last dims of both
    # operands so no explicit transpose of S is materialized.
    SR = jnp.einsum("bnk,bkm->bnm", S, r_ref[...],
                    preferred_element_type=jnp.float32)          # (Bt, n, k)
    recon = jnp.einsum("bnk,bmk->bnm", SR, S,
                       preferred_element_type=jnp.float32)       # (Bt, n, n)
    recon_ref[...] = recon

    # loss_b = sqrt(sum_b((target - recon)^2))  (Frobenius norm per batch elem)
    diff = m_ref[...] - recon
    loss_ref[...] = jnp.sqrt(jnp.sum(diff * diff, axis=(1, 2), keepdims=True))


def _choose_block(B: int) -> int:
    if B <= 1:
        return 1
    # Cap for VMEM (Bt=64 -> ~13.5 MB double-buffered with lane padding, fits
    # the default scoped VMEM on v5e/v6e/v7x) and keep grid >= 2 for megacore.
    return min(64, (B + 1) // 2)


@functools.partial(jax.jit, static_argnames=("a_constraint",))
def dedicom_forward_batched(A, R, M, a_constraint=None):
    """Batched Dedicom forward: Bt (A, R, M) triples per grid step.

    A: (B, n, k), R: (B, k, k), M: (B, n, n) -> (recon (B, n, n), loss (B,))
    """
    if A.dtype != jnp.float32:
        A = A.astype(jnp.float32)
    if R.dtype != jnp.float32:
        R = R.astype(jnp.float32)
    if M.dtype != jnp.float32:
        M = M.astype(jnp.float32)

    B, n, k = A.shape
    use_softmax = a_constraint == "col_scaled_row_softmax"
    kernel = functools.partial(_dedicom_kernel, use_softmax=use_softmax)

    # Batch-block size and zero-padding so B_pad % Bt == 0 (padded results are
    # sliced off below; pad rows may contain NaN in softmax mode — discarded).
    Bt = _choose_block(B)
    grid_b = pl.cdiv(B, Bt)
    B_pad = grid_b * Bt
    if B_pad != B:
        pad = B_pad - B
        A = jnp.pad(A, ((0, pad), (0, 0), (0, 0)))
        R = jnp.pad(R, ((0, pad), (0, 0), (0, 0)))
        M = jnp.pad(M, ((0, pad), (0, 0), (0, 0)))

    # Advisory cost hint so XLA schedules/overlaps this custom call.
    flops_per = 2 * n * k * k + 2 * n * n * k + 8 * n * k + 4 * n * n
    cost = pl.CostEstimate(
        flops=B_pad * flops_per,
        transcendentals=B_pad * ((n * k + n + k) if use_softmax else 1),
        bytes_accessed=B_pad * 4 * (n * k + k * k + 2 * n * n + 1),
    )

    recon, loss = pl.pallas_call(
        kernel,
        grid=(grid_b,),
        in_specs=[
            pl.BlockSpec((Bt, n, k), lambda b: (b, 0, 0)),
            pl.BlockSpec((Bt, k, k), lambda b: (b, 0, 0)),
            pl.BlockSpec((Bt, n, n), lambda b: (b, 0, 0)),
        ],
        out_specs=(
            pl.BlockSpec((Bt, n, n), lambda b: (b, 0, 0)),
            pl.BlockSpec((Bt, 1, 1), lambda b: (b, 0, 0)),
        ),
        out_shape=(
            jax.ShapeDtypeStruct((B_pad, n, n), jnp.float32),
            jax.ShapeDtypeStruct((B_pad, 1, 1), jnp.float32),
        ),
        compiler_params=pltpu.CompilerParams(
            # Batch-block axis is independent -> megacore-shardable on v7x.
            dimension_semantics=("parallel",),
        ),
        cost_estimate=cost,
    )(A, R, M)

    return recon[:B], loss.reshape(B_pad)[:B]


def dedicom_forward(A, R, M, a_constraint=None):
    """Pallas equivalent of Dedicom.forward(target=None) -> (M_recon, loss).

    Convenience B=1 entry point; real workloads should batch many (A, R, M)
    triples through dedicom_forward_batched to amortize fixed call overhead.
    """
    recon, loss = dedicom_forward_batched(
        A[None], R[None], M[None], a_constraint=a_constraint
    )
    return recon[0], loss[0]


def init_dedicom_params(key, n, k, M):
    """Deterministic parameter init matching the module's __init__ shapes:
    A ~ U(0, 2) of shape (n, k); R ~ U(0, 2) * M.mean() of shape (k, k)."""
    ka, kr = jax.random.split(key)
    A = jax.random.uniform(ka, (n, k), jnp.float32, minval=0.0, maxval=2.0)
    R = jax.random.uniform(kr, (k, k), jnp.float32, minval=0.0, maxval=2.0) * jnp.mean(M)
    return A, R


if __name__ == "__main__":
    n, k = 64, 16
    key = jax.random.PRNGKey(0)
    km, kp, kb = jax.random.split(key, 3)

    # Synthetic co-occurrence-like target matrix M (n, n), nonnegative.
    M = jax.random.uniform(km, (n, n), jnp.float32, minval=0.0, maxval=5.0)
    A, R = init_dedicom_params(kp, n, k, M)

    # Single-problem forward (module semantics), both constraint modes.
    recon_plain, loss_plain = dedicom_forward(A, R, M, a_constraint=None)
    recon_sm, loss_sm = dedicom_forward(A, R, M, a_constraint="col_scaled_row_softmax")

    # Batched forward: B=7 exercises batch-blocking (Bt=4, grid=2) and the
    # zero-padding of the trailing partial block.
    B = 7
    kA, kR, kM = jax.random.split(kb, 3)
    Ab = jax.random.uniform(kA, (B, n, k), jnp.float32, minval=0.0, maxval=2.0)
    Rb = jax.random.uniform(kR, (B, k, k), jnp.float32, minval=0.0, maxval=2.0)
    Mb = jax.random.uniform(kM, (B, n, n), jnp.float32, minval=0.0, maxval=5.0)
    recon_b, loss_b = dedicom_forward_batched(
        Ab, Rb, Mb, a_constraint="col_scaled_row_softmax"
    )
    recon_bp, loss_bp = dedicom_forward_batched(Ab, Rb, Mb, a_constraint=None)

    jax.block_until_ready(
        (recon_plain, loss_plain, recon_sm, loss_sm,
         recon_b, loss_b, recon_bp, loss_bp)
    )

    # Lightweight correctness check against a pure-JAX reference.
    def ref_forward(A, R, M, use_softmax):
        if use_softmax:
            mu = A.mean(axis=0)
            sd = jnp.sqrt(((A - mu) ** 2).sum(axis=0) / (A.shape[0] - 1))
            S = jax.nn.softmax((A - mu) / sd, axis=1)
        else:
            S = A
        rec = S @ R @ S.T
        return rec, jnp.sqrt(jnp.sum((M - rec) ** 2))

    r0, l0 = ref_forward(A, R, M, False)
    r1, l1 = ref_forward(A, R, M, True)
    rb, lb = jax.vmap(lambda a, r, m: ref_forward(a, r, m, True))(Ab, Rb, Mb)
    rbp, lbp = jax.vmap(lambda a, r, m: ref_forward(a, r, m, False))(Ab, Rb, Mb)

    tol = dict(rtol=2e-4, atol=2e-4)
    assert jnp.allclose(recon_plain, r0, **tol)
    assert jnp.allclose(loss_plain, l0, **tol)
    assert jnp.allclose(recon_sm, r1, **tol)
    assert jnp.allclose(loss_sm, l1, **tol)
    assert jnp.allclose(recon_b, rb, **tol)
    assert jnp.allclose(loss_b, lb, **tol)
    assert jnp.allclose(recon_bp, rbp, **tol)
    assert jnp.allclose(loss_bp, lbp, **tol)

    print("KERNEL_OK")
</pallas_src>

<mosaic_0001>
module attributes {stable_mosaic.version = 11 : i64} {
  func.func @_dedicom_kernel(%arg0: i32, %arg1: memref<1x64x16xf32, #tpu.memory_space<vmem>>, %arg2: memref<1x16x16xf32, #tpu.memory_space<vmem>>, %arg3: memref<1x64x64xf32, #tpu.memory_space<vmem>>, %arg4: memref<1x64x64xf32, #tpu.memory_space<vmem>>, %arg5: memref<1x1x1xf32, #tpu.memory_space<vmem>>) attributes {dimension_semantics = [#tpu.dimension_semantics<parallel>], iteration_bounds = array<i64: 1>, scalar_prefetch = 0 : i64, scratch_operands = 0 : i64, tpu.core_type = #tpu.core_type<tc>, window_params = [{transform_indices = @transform_0, window_bounds = array<i64: 1, 64, 16>}, {transform_indices = @transform_1, window_bounds = array<i64: 1, 16, 16>}, {transform_indices = @transform_2, window_bounds = array<i64: 1, 64, 64>}, {transform_indices = @transform_3, window_bounds = array<i64: 1, 64, 64>}, {transform_indices = @transform_4, window_bounds = array<i64: 1, 1, 1>}]} {
    %c0 = arith.constant 0 : index
    %c0_0 = arith.constant 0 : index
    %c0_1 = arith.constant 0 : index
    %0 = vector.load %arg1[%c0, %c0_0, %c0_1] : memref<1x64x16xf32, #tpu.memory_space<vmem>>, vector<1x64x16xf32>
    %c0_2 = arith.constant 0 : index
    %c0_3 = arith.constant 0 : index
    %c0_4 = arith.constant 0 : index
    %1 = vector.load %arg2[%c0_2, %c0_3, %c0_4] : memref<1x16x16xf32, #tpu.memory_space<vmem>>, vector<1x16x16xf32>
    "tpu.trace_start"() <{level = 10 : i32, message = "bnk,bkm->bnm"}> : () -> ()
    %cst = arith.constant dense<0.000000e+00> : vector<1x64x16xf32>
    %2 = tpu.matmul %0, %1, %cst {dimension_numbers = #tpu.dot_dimension_numbers<[2], [1], [1], [2], [0, 0, 0, 1, 1, 2], [0], [0]>} : vector<1x64x16xf32>, vector<1x16x16xf32>, vector<1x64x16xf32> -> vector<1x64x16xf32>
    "tpu.trace_stop"() : () -> ()
    "tpu.trace_start"() <{level = 10 : i32, message = "bnk,bmk->bnm"}> : () -> ()
    %cst_5 = arith.constant dense<0.000000e+00> : vector<1x64x64xf32>
    %3 = tpu.matmul %2, %0, %cst_5 {dimension_numbers = #tpu.dot_dimension_numbers<[2], [2], [1], [1], [0, 0, 0, 1, 1, 1], [0], [0]>} : vector<1x64x16xf32>, vector<1x64x16xf32>, vector<1x64x64xf32> -> vector<1x64x64xf32>
    "tpu.trace_stop"() : () -> ()
    %c0_6 = arith.constant 0 : index
    %c0_7 = arith.constant 0 : index
    %c0_8 = arith.constant 0 : index
    %4 = vector.load %arg4[%c0_6, %c0_7, %c0_8] : memref<1x64x64xf32, #tpu.memory_space<vmem>>, vector<1x64x64xf32>
    tpu.vector_store %arg4[%c0_6, %c0_7, %c0_8], %3 {strides = array<i32>} : memref<1x64x64xf32, #tpu.memory_space<vmem>>, vector<1x64x64xf32>,
    %c0_9 = arith.constant 0 : index
    %c0_10 = arith.constant 0 : index
    %c0_11 = arith.constant 0 : index
    %5 = vector.load %arg3[%c0_9, %c0_10, %c0_11] : memref<1x64x64xf32, #tpu.memory_space<vmem>>, vector<1x64x64xf32>
    %6 = arith.subf %5, %3 : vector<1x64x64xf32>
    %7 = arith.mulf %6, %6 : vector<1x64x64xf32>
    %cst_12 = arith.constant dense<0.000000e+00> : vector<1xf32>
    %8 = vector.multi_reduction <add>, %7, %cst_12 [1, 2] : vector<1x64x64xf32> to vector<1xf32>
    %9 = vector.shape_cast %8 : vector<1xf32> to vector<1x1x1xf32>
    %10 = math.sqrt %9 : vector<1x1x1xf32>
    %c0_13 = arith.constant 0 : index
    %c0_14 = arith.constant 0 : index
    %c0_15 = arith.constant 0 : index
    %11 = vector.load %arg5[%c0_13, %c0_14, %c0_15] : memref<1x1x1xf32, #tpu.memory_space<vmem>>, vector<1x1x1xf32>
    tpu.vector_store %arg5[%c0_13, %c0_14, %c0_15], %10 {strides = array<i32>} : memref<1x1x1xf32, #tpu.memory_space<vmem>>, vector<1x1x1xf32>,
    return
  }
  func.func @transform_0(%arg0: i32) -> (i32, i32, i32) {
    %c0_i32 = arith.constant 0 : i32
    %c0_i32_0 = arith.constant 0 : i32
    %c0_i32_1 = arith.constant 0 : i32
    return %arg0, %c0_i32, %c0_i32_0 : i32, i32, i32
  }
  func.func @transform_1(%arg0: i32) -> (i32, i32, i32) {
    %c0_i32 = arith.constant 0 : i32
    %c0_i32_0 = arith.constant 0 : i32
    %c0_i32_1 = arith.constant 0 : i32
    return %arg0, %c0_i32, %c0_i32_0 : i32, i32, i32
  }
  func.func @transform_2(%arg0: i32) -> (i32, i32, i32) {
    %c0_i32 = arith.constant 0 : i32
    %c0_i32_0 = arith.constant 0 : i32
    %c0_i32_1 = arith.constant 0 : i32
    return %arg0, %c0_i32, %c0_i32_0 : i32, i32, i32
  }
  func.func @transform_3(%arg0: i32) -> (i32, i32, i32) {
    %c0_i32 = arith.constant 0 : i32
    %c0_i32_0 = arith.constant 0 : i32
    %c0_i32_1 = arith.constant 0 : i32
    return %arg0, %c0_i32, %c0_i32_0 : i32, i32, i32
  }
  func.func @transform_4(%arg0: i32) -> (i32, i32, i32) {
    %c0_i32 = arith.constant 0 : i32
    %c0_i32_0 = arith.constant 0 : i32
    %c0_i32_1 = arith.constant 0 : i32
    return %arg0, %c0_i32, %c0_i32_0 : i32, i32, i32
  }
}

</mosaic_0001>

<llo_original>
// kernel: dedicom_forward_batched.1
$region0: #{dedicom_forward_batched.1}
  #allocation0 [shape = 'u32[]', space=smem, size = 0x4, offset = 0x4, fixed_abs, tag = 'smem constant byte address 0x4 - core index']
  #allocation1 [shape = 'u32[72,128]{1,0:T(1,128)}', space=vmem, size = 0x9000, scoped, tag = 'internal scratch']
  %s0 = inlined_call_operand.vmem [shape: f32[1,64,16], index: 0, kind: input, shape index: {}]
  %s1 = inlined_call_operand.vmem [shape: f32[1,16,16], index: 1, kind: input, shape index: {}]
  %s2 = inlined_call_operand.vmem [shape: f32[1,64,64], index: 2, kind: input, shape index: {}]
  %s3 = inlined_call_operand.hbm [shape: f32[1,64,64], index: 3, kind: output, shape index: {0}]
  %s4 = inlined_call_operand.hbm [shape: f32[1,1,1], index: 4, kind: output, shape index: {1}]
  %5 = xla_tuple %s3, %s4
  %s6 = sld [smem:[#allocation0]]
  $region30: #{dedicom_forward_batched.1} parent=0
    _
  %s8 = ssub.s32 1, %s6
  %s9 = scalar_select 0, %s8, %s6
  $region1: #{dedicom_forward_batched.1} parent=0
    #allocation2 [shape = 'u8[32768]{0}', space=vmem, size = 0x8000, scoped, tag = 'output window, operand 0, single buffered']
    #allocation3 [shape = 's32[1]{0}', space=sflag, size = 0x4, scoped, tag = 'scoped memory for dedicom_forward_batched.1']
    #allocation4 [shape = 'u8[512]{0}', space=vmem, size = 0x400, scoped, tag = 'output window, operand 1, single buffered']
    #allocation5 [shape = 's32[1]{0}', space=sflag, size = 0x4, scoped, tag = 'scoped memory for dedicom_forward_batched.1']
    %10 = vsyncpa [#allocation3], 0
    %11 = vsyncpa [#allocation5], 0
    // Predicated region
    $region2: #{dedicom_forward_batched.1} parent=1 // pred_check
      _
    $region3: #{dedicom_forward_batched.1} parent=1 // pred_check_branch
      %13 = sbr.rel (0) target = $region5
    $region4: #{dedicom_forward_batched.1} parent=1 // pred_region
      _
    $region5: #{dedicom_forward_batched.1} parent=1 // pred_fallthru
      _
    // Predicated region
    $region6: #{dedicom_forward_batched.1} parent=1 // pred_check
      _
    $region7: #{dedicom_forward_batched.1} parent=1 // pred_check_branch
      %15 = sbr.rel (0) target = $region9
    $region8: #{dedicom_forward_batched.1} parent=1 // pred_region
      _
    $region9: #{dedicom_forward_batched.1} parent=1 // pred_fallthru
      _
    // Predicated region
    $region10: #{dedicom_forward_batched.1} parent=1 // pred_check
      _
    $region11: #{dedicom_forward_batched.1} parent=1 // pred_check_branch
      %17 = sbr.rel (0) target = $region13
    $region12: #{dedicom_forward_batched.1} parent=1 // pred_region
      _
    $region13: #{dedicom_forward_batched.1} parent=1 // pred_fallthru
      _
    %v18 = vld [vmem:[%s0] sm:$0xff]
    %v19 = vld [vmem:[%s0 + $0x8] sm:$0xff]
    %v20 = vld [vmem:[%s0 + $0x10] sm:$0xff]
    %v21 = vld [vmem:[%s0 + $0x18] sm:$0xff]
    %v22 = vld [vmem:[%s0 + $0x20] sm:$0xff]
    %v23 = vld [vmem:[%s0 + $0x28] sm:$0xff]
    %v24 = vld [vmem:[%s0 + $0x30] sm:$0xff]
    %v25 = vld [vmem:[%s0 + $0x38] sm:$0xff]
    %v26 = vld [vmem:[%s1] sm:$0xff]
    %v27 = vld [vmem:[%s1 + $0x8] sm:$0xff]
    %vm28 = vcmask 130048
    %v30 = vsel %vm28, %v18, 0
    %v33 = vsel %vm28, %v19, 0
    %v36 = vsel %vm28, %v20, 0
    %v39 = vsel %vm28, %v21, 0
    %v42 = vsel %vm28, %v22, 0
    %v45 = vsel %vm28, %v23, 0
    %v48 = vsel %vm28, %v24, 0
    %v51 = vsel %vm28, %v25, 0
    %53 = vmatpush.msra.mxu0 0.0
    %54 = vmatpush.msra.mxu0 0.0
    %55 = vmatpush.msra.mxu0 0.0
    %56 = vmatpush.msra.mxu0 0.0
    %57 = vmatpush.msra.mxu0 0.0
    %58 = vmatpush.msra.mxu0 0.0
    %59 = vmatpush.msra.mxu0 0.0
    %60 = vmatpush.msra.mxu0 0.0
    %61 = vmatpush.msra.mxu0 0.0
    %62 = vmatpush.msra.mxu0 0.0
    %63 = vmatpush.msra.mxu0 0.0
    %64 = vmatpush.msra.mxu0 0.0
    %65 = vmatpush.msra.mxu0 0.0
    %66 = vmatpush.msra.mxu0 0.0
    %67 = vmatpush.msra.mxu0 %v27
    %68 = vmatpush.msra.mxu0 %v26
    %69 = vmatmul.f32.gmra.mxu0 %v30
    %v70 = vpop.f32.mrf.mxu0
    %v71 = vadd.f32 0.0, %v70
    %72 = vmatmul.f32.gmra.mxu0 %v33
    %v73 = vpop.f32.mrf.mxu0
    %v74 = vadd.f32 0.0, %v73
    %75 = vmatmul.f32.gmra.mxu0 %v36
    %v76 = vpop.f32.mrf.mxu0
    %v77 = vadd.f32 0.0, %v76
    %78 = vmatmul.f32.gmra.mxu0 %v39
    %v79 = vpop.f32.mrf.mxu0
    %v80 = vadd.f32 0.0, %v79
    %81 = vmatmul.f32.gmra.mxu0 %v42
    %v82 = vpop.f32.mrf.mxu0
    %v83 = vadd.f32 0.0, %v82
    %84 = vmatmul.f32.gmra.mxu0 %v45
    %v85 = vpop.f32.mrf.mxu0
    %v86 = vadd.f32 0.0, %v85
    %87 = vmatmul.f32.gmra.mxu0 %v48
    %v88 = vpop.f32.mrf.mxu0
    %v89 = vadd.f32 0.0, %v88
    %90 = vmatmul.f32.gmra.mxu0 %v51
    %v91 = vpop.f32.mrf.mxu0
    %v92 = vadd.f32 0.0, %v91
    %93 = vdwg.mxu0
    %v95 = vsel %vm28, %v71, 0
    %v98 = vsel %vm28, %v74, 0
    %v101 = vsel %vm28, %v77, 0
    %v104 = vsel %vm28, %v80, 0
    %v107 = vsel %vm28, %v83, 0
    %v110 = vsel %vm28, %v86, 0
    %v113 = vsel %vm28, %v89, 0
    %v116 = vsel %vm28, %v92, 0
    %118 = vmatpush.xpose.msra.mxu0 0.0
    %119 = vmatpush.xpose.msra.mxu0 0.0
    %120 = vmatpush.xpose.msra.mxu0 0.0
    %121 = vmatpush.xpose.msra.mxu0 0.0
    %122 = vmatpush.xpose.msra.mxu0 0.0
    %123 = vmatpush.xpose.msra.mxu0 0.0
    %124 = vmatpush.xpose.msra.mxu0 0.0
    %125 = vmatpush.xpose.msra.mxu0 0.0
    %126 = vmatpush.xpose.msra.mxu0 %v51
    %127 = vmatpush.xpose.msra.mxu0 %v48
    %128 = vmatpush.xpose.msra.mxu0 %v45
    %129 = vmatpush.xpose.msra.mxu0 %v42
    %130 = vmatpush.xpose.msra.mxu0 %v39
    %131 = vmatpush.xpose.msra.mxu0 %v36
    %132 = vmatpush.xpose.msra.mxu0 %v33
    %133 = vmatpush.xpose.msra.mxu0 %v30
    %134 = vmatmul.f32.gmra.mxu0 %v95
    %v135 = vpop.f32.mrf.mxu0
    %v136 = vadd.f32 0.0, %v135
    %137 = vmatmul.f32.gmra.mxu0 %v98
    %v138 = vpop.f32.mrf.mxu0
    %v139 = vadd.f32 0.0, %v138
    %140 = vmatmul.f32.gmra.mxu0 %v101
    %v141 = vpop.f32.mrf.mxu0
    %v142 = vadd.f32 0.0, %v141
    %143 = vmatmul.f32.gmra.mxu0 %v104
    %v144 = vpop.f32.mrf.mxu0
    %v145 = vadd.f32 0.0, %v144
    %146 = vmatmul.f32.gmra.mxu0 %v107
    %v147 = vpop.f32.mrf.mxu0
    %v148 = vadd.f32 0.0, %v147
    %149 = vmatmul.f32.gmra.mxu0 %v110
    %v150 = vpop.f32.mrf.mxu0
    %v151 = vadd.f32 0.0, %v150
    %152 = vmatmul.f32.gmra.mxu0 %v113
    %v153 = vpop.f32.mrf.mxu0
    %v154 = vadd.f32 0.0, %v153
    %155 = vmatmul.f32.gmra.mxu0 %v116
    %v156 = vpop.f32.mrf.mxu0
    %v157 = vadd.f32 0.0, %v156
    %158 = vdwg.mxu0
    %vm159 = vcmask 523264
    %160 = vst.msk [vmem:[#allocation2] sm:$0xff] %vm159, %v136
    %161 = vst.msk [vmem:[#allocation2 + $0x8] sm:$0xff] %vm159, %v139
    %162 = vst.msk [vmem:[#allocation2 + $0x10] sm:$0xff] %vm159, %v142
    %163 = vst.msk [vmem:[#allocation2 + $0x18] sm:$0xff] %vm159, %v145
    %164 = vst.msk [vmem:[#allocation2 + $0x20] sm:$0xff] %vm159, %v148
    %165 = vst.msk [vmem:[#allocation2 + $0x28] sm:$0xff] %vm159, %v151
    %166 = vst.msk [vmem:[#allocation2 + $0x30] sm:$0xff] %vm159, %v154
    %167 = vst.msk [vmem:[#allocation2 + $0x38] sm:$0xff] %vm159, %v157
    %v168 = vld [vmem:[%s2] sm:$0xff]
    %v169 = vld [vmem:[%s2 + $0x8] sm:$0xff]
    %v170 = vld [vmem:[%s2 + $0x10] sm:$0xff]
    %v171 = vld [vmem:[%s2 + $0x18] sm:$0xff]
    %v172 = vld [vmem:[%s2 + $0x20] sm:$0xff]
    %v173 = vld [vmem:[%s2 + $0x28] sm:$0xff]
    %v174 = vld [vmem:[%s2 + $0x30] sm:$0xff]
    %v175 = vld [vmem:[%s2 + $0x38] sm:$0xff]
    %v176 = vsub.f32 %v168, %v136
    %v177 = vsub.f32 %v169, %v139
    %v178 = vsub.f32 %v170, %v142
    %v179 = vsub.f32 %v171, %v145
    %v180 = vsub.f32 %v172, %v148
    %v181 = vsub.f32 %v173, %v151
    %v182 = vsub.f32 %v174, %v154
    %v183 = vsub.f32 %v175, %v157
    %v184 = vmul.f32 %v176, %v176
    %v185 = vmul.f32 %v177, %v177
    %v186 = vmul.f32 %v178, %v178
    %v187 = vmul.f32 %v179, %v179
    %v188 = vmul.f32 %v180, %v180
    %v189 = vmul.f32 %v181, %v181
    %v190 = vmul.f32 %v182, %v182
    %v191 = vmul.f32 %v183, %v183
    %v192 = vsel %vm159, %v184, 0.0
    %v193 = vsel %vm159, %v185, 0.0
    %v194 = vadd.f32 %v192, %v193
    %v195 = vsel %vm159, %v186, 0.0
    %v196 = vadd.f32 %v194, %v195
    %v197 = vsel %vm159, %v187, 0.0
    %v198 = vadd.f32 %v196, %v197
    %v199 = vsel %vm159, %v188, 0.0
    %v200 = vadd.f32 %v198, %v199
    %v201 = vsel %vm159, %v189, 0.0
    %v202 = vadd.f32 %v200, %v201
    %v203 = vsel %vm159, %v190, 0.0
    %v204 = vadd.f32 %v202, %v203
    %v205 = vsel %vm159, %v191, 0.0
    %v206 = vadd.f32 %v204, %v205
    %207 = vadd.xlane.f32.xlu0 %v206
    %v208 = vpop.xlane.xlu0 %207
    %v209 = vrot.slane %v208, 4
    %v210 = vadd.f32 %v208, %v209
    %v211 = vrot.slane %v210, 2
    %v212 = vadd.f32 %v210, %v211
    %v213 = vrot.slane %v212, 1
    %v214 = vadd.f32 %v212, %v213
    %v215 = vrsqrt.pop %v214
    %v216 = vmul.f32 %v215, %v214
    %v217 = vmul.f32 %v216, %v215
    %v218 = vmul.f32 0.5, %v217
    %v219 = vsub.f32 1.5, %v218
    %v220 = vmul.f32 %v215, %v219
    %v221 = vmul.f32 %v214, %v220
    %vm222 = vcmp.eq.f32.partialorder %v214, inf
    %v223 = vsel %vm222, %v214, %v221
    %vm224 = vcmp.eq.f32.partialorder %v214, 0.0
    %v225 = vand.u32 %v214, 2147483648
    %v226 = vsel %vm224, %v225, %v223
    %vm227 = vcmask 0
    %228 = vst.msk [vmem:[#allocation4] sm:$0x1] %vm227, %v226
    // Predicated region
    $region14: #{dedicom_forward_batched.1} parent=1 // pred_check
      _
    $region15: #{dedicom_forward_batched.1} parent=1 // pred_check_branch
      %230 = sbr.rel (0) target = $region17
    $region16: #{dedicom_forward_batched.1} parent=1 // pred_region
      %232 = vsyncadd [#allocation3], 0
      %s233 = sshll.u32 [#allocation2], 4
      %s234 = int_to_ptr.vmem [resolvable:$true] %s233
      %s235 = sshll.u32 %s3, 4
      %s236 = int_to_ptr.hbm [resolvable:$true] %s235
      %241 = dma.vmem_to_hbm [thread:$0]  %s234, 1024, %s236, [#allocation3], 128, 128, 8
    $region17: #{dedicom_forward_batched.1} parent=1 // pred_fallthru
      _
    // Predicated region
    $region18: #{dedicom_forward_batched.1} parent=1 // pred_check
      _
    $region19: #{dedicom_forward_batched.1} parent=1 // pred_check_branch
      %243 = sbr.rel (0) target = $region21
    $region20: #{dedicom_forward_batched.1} parent=1 // pred_region
      %245 = vsyncadd [#allocation5], 0
      %s247 = sshll.u32 [#allocation4], 4
      %s248 = int_to_ptr.vmem [resolvable:$true] %s247
      %s249 = sshll.u32 %s4, 4
      %s250 = int_to_ptr.hbm [resolvable:$true] %s249
      %252 = dma.vmem_to_hbm [thread:$0]  %s248, 16, %s250, [#allocation5]
    $region21: #{dedicom_forward_batched.1} parent=1 // pred_fallthru
      _
    // Predicated region
    $region22: #{dedicom_forward_batched.1} parent=1 // pred_check
      _
    $region23: #{dedicom_forward_batched.1} parent=1 // pred_check_branch
      %254 = sbr.rel (0) target = $region25
    $region24: #{dedicom_forward_batched.1} parent=1 // pred_region
      %256 = dma.done [#allocation3], 1024
    $region25: #{dedicom_forward_batched.1} parent=1 // pred_fallthru
      _
    // Predicated region
    $region26: #{dedicom_forward_batched.1} parent=1 // pred_check
      _
    $region27: #{dedicom_forward_batched.1} parent=1 // pred_check_branch
      %258 = sbr.rel (0) target = $region29
    $region28: #{dedicom_forward_batched.1} parent=1 // pred_region
      %260 = dma.done [#allocation5], 16
    $region29: #{dedicom_forward_batched.1} parent=1 // pred_fallthru
      _
    %261 = vsyncpa [#allocation3], 1
    %262 = vsyncpa [#allocation5], 1

</llo_original>
